<compile_context>
chip_gen: v6e
topology: v6e:2x2x1
jax: 0.10.0
libtpu: 0.0.40
codegen_flags: <defaults>
</compile_context>

<pallas_src>
from functools import partial

import jax
import jax.numpy as jnp
from jax.experimental import pallas as pl
from jax.experimental.pallas import tpu as pltpu

LANE = 128
_MiB = 1024 * 1024
# Below this slab size a single block is cheapest (one grid step, no pipeline
# fill/drain); above it we always emit >= 2 blocks so dimension_semantics
# ("parallel",) can actually shard across v7x's two TensorCores.
SPLIT_THRESHOLD_BYTES = 2 * _MiB


def _tpu_generation_params():
    """Returns (target_block_bytes, vmem_limit_cap) tuned per TPU generation."""
    try:
        vmem_cap = pltpu.get_tpu_info().vmem_capacity_bytes
    except Exception:
        vmem_cap = None
    if vmem_cap is not None and vmem_cap <= 64 * _MiB:
        # v7x: only 64 MiB VMEM but ~3.2 TB/s HBM -> larger blocks amortize the
        # ~0.35us fixed per-step overhead; 4x block (in+out, double-buffered)
        # stays <= 48 MiB, well under the 64 MiB physical limit.
        return 8 * _MiB, 48 * _MiB
    # v5e / v6e: 128 MiB VMEM; 4 MiB blocks already sit at the measured ~86%
    # HBM-roofline plateau.  Lift the cap so it never constrains these parts.
    return 4 * _MiB, 100 * _MiB


def _leaky_relu_kernel(x_ref, o_ref, *, alpha, use_max):
    x = x_ref[...]
    a = jnp.asarray(alpha, x.dtype)
    if use_max:
        # 2 VPU ops, no boolean-mask vreg (valid because 0 <= alpha <= 1).
        o_ref[...] = jnp.maximum(x, x * a)
    else:
        o_ref[...] = jnp.where(x >= 0, x, a * x)


def leaky_relu(x, alpha=0.01):
    """LeakyReLU forward matching the PyTorch module semantics."""
    orig_shape = x.shape
    dtype = x.dtype
    n = x.size
    itemsize = jnp.dtype(dtype).itemsize
    alpha = float(alpha)
    use_max = 0.0 <= alpha <= 1.0

    if n == 0:
        return x

    # Ragged sizes: padding in the wrapper + the final slice would each be a
    # full read+write of the tensor (~3x HBM traffic for a mem-bound op).
    # XLA does the whole thing in one fused HBM pass, so just fall back.
    if n % LANE != 0:
        a = jnp.asarray(alpha, dtype)
        return jnp.maximum(x, x * a) if use_max else jnp.where(x >= 0, x, a * x)

    # Lane-dense slab: (rows, 128).  No padding needed on this path.
    rows = n // LANE
    slab = x.reshape(rows, LANE)

    # Sublane packing: 8 rows/vreg for 32-bit, 16 for bf16, 32 for 8-bit dtypes.
    sublane = max(8, 32 // itemsize)

    target_block_bytes, vmem_cap = _tpu_generation_params()
    slab_bytes = rows * LANE * itemsize

    if slab_bytes <= SPLIT_THRESHOLD_BYTES:
        # Tiny input: one full-extent block (always a legal block shape).
        block_rows = rows
    else:
        target_rows = max(
            sublane,
            (target_block_bytes // (LANE * itemsize)) // sublane * sublane)
        # Always >= 2 blocks (use both TCs on v7x), and round the block count
        # up to an even number so small grids split into near-equal halves
        # instead of leaving one TensorCore a ragged tail.
        nblocks = max(2, pl.cdiv(rows, target_rows))
        nblocks = ((nblocks + 1) // 2) * 2
        block_rows = pl.cdiv(rows, nblocks)
        block_rows = ((block_rows + sublane - 1) // sublane) * sublane
        block_rows = min(block_rows, rows)

    grid = (pl.cdiv(rows, block_rows),)  # ragged last block handled by Pallas

    # VMEM budget: in + out, each double-buffered -> 4x block bytes + headroom,
    # capped per generation (48 MiB on v7x, 100 MiB on 128-MiB-VMEM parts).
    # NOTE: pipeline_mode=pl.Buffered(3) is a possible v7x sweep (bump to 6x);
    # only worth keeping if measured faster, so it is not enabled by default.
    block_bytes = block_rows * LANE * itemsize
    vmem_limit = int(min(vmem_cap, max(16 * _MiB, 4 * block_bytes + (2 << 20))))

    out = pl.pallas_call(
        partial(_leaky_relu_kernel, alpha=alpha, use_max=use_max),
        out_shape=jax.ShapeDtypeStruct((rows, LANE), dtype),
        grid_spec=pltpu.PrefetchScalarGridSpec(
            num_scalar_prefetch=0,
            grid=grid,
            in_specs=[pl.BlockSpec((block_rows, LANE), lambda i: (i, 0))],
            out_specs=pl.BlockSpec((block_rows, LANE), lambda i: (i, 0)),
        ),
        compiler_params=pltpu.CompilerParams(
            dimension_semantics=("parallel",),   # shards across v7x's 2 TCs
            vmem_limit_bytes=vmem_limit,
        ),
    )(slab)

    return out.reshape(orig_shape)


def leaky_relu_ref(x, alpha=0.01):
    # Pure-JAX reference mirroring the PyTorch clamp-based expression.
    return jnp.clip(x, 0.0, None) + alpha * jnp.clip(x, None, 0.0)


# TODO(synk): backward() (grad-wrt-input) and param() bookkeeping from the
# PyTorch Module are not part of the forward pass and are not implemented here.

if __name__ == "__main__":
    key = jax.random.PRNGKey(0)
    # NCHW input consistent with typical module usage: batch=2, channels=4, 16x16 spatial.
    x = jax.random.normal(key, (2, 4, 16, 16), dtype=jnp.float32)

    y = leaky_relu(x, alpha=0.01)
    y = jax.block_until_ready(y)

    y_ref = leaky_relu_ref(x, alpha=0.01)
    assert y.shape == x.shape and y.dtype == x.dtype
    assert jnp.allclose(y, y_ref, atol=1e-6, rtol=1e-6)

    # Also exercise the ragged-size fallback path (n % 128 != 0).
    x_ragged = jax.random.normal(jax.random.PRNGKey(1), (3, 5, 7), dtype=jnp.float32)
    y_ragged = jax.block_until_ready(leaky_relu(x_ragged, alpha=0.01))
    assert jnp.allclose(y_ragged, leaky_relu_ref(x_ragged, 0.01), atol=1e-6, rtol=1e-6)

    print("KERNEL_OK")
</pallas_src>

<mosaic_0001>
module attributes {stable_mosaic.version = 11 : i64} {
  func.func @_leaky_relu_kernel(%arg0: i32, %arg1: memref<16x128xf32, #tpu.memory_space<vmem>>, %arg2: memref<16x128xf32, #tpu.memory_space<vmem>>) attributes {dimension_semantics = [#tpu.dimension_semantics<parallel>], iteration_bounds = array<i64: 1>, scalar_prefetch = 0 : i64, scratch_operands = 0 : i64, tpu.core_type = #tpu.core_type<tc>, window_params = [{transform_indices = @transform_0, window_bounds = array<i64: 16, 128>}, {transform_indices = @transform_1, window_bounds = array<i64: 16, 128>}]} {
    %c0 = arith.constant 0 : index
    %c0_0 = arith.constant 0 : index
    %0 = vector.load %arg1[%c0, %c0_0] : memref<16x128xf32, #tpu.memory_space<vmem>>, vector<16x128xf32>
    %cst = arith.constant 0.00999999977 : f32
    %1 = vector.broadcast %cst : f32 to vector<16x128xf32>
    %2 = arith.mulf %0, %1 : vector<16x128xf32>
    %3 = arith.maximumf %0, %2 : vector<16x128xf32>
    %c0_1 = arith.constant 0 : index
    %c0_2 = arith.constant 0 : index
    %4 = vector.load %arg2[%c0_1, %c0_2] : memref<16x128xf32, #tpu.memory_space<vmem>>, vector<16x128xf32>
    tpu.vector_store %arg2[%c0_1, %c0_2], %3 {strides = array<i32>} : memref<16x128xf32, #tpu.memory_space<vmem>>, vector<16x128xf32>,
    return
  }
  func.func @transform_0(%arg0: i32) -> (i32, i32) {
    %c0_i32 = arith.constant 0 : i32
    %c0_i32_0 = arith.constant 0 : i32
    return %arg0, %c0_i32 : i32, i32
  }
  func.func @transform_1(%arg0: i32) -> (i32, i32) {
    %c0_i32 = arith.constant 0 : i32
    %c0_i32_0 = arith.constant 0 : i32
    return %arg0, %c0_i32 : i32, i32
  }
}

</mosaic_0001>

<llo_original>
// kernel: tpu_custom_call.1
$region0: #{tpu_custom_call.1}
  #allocation0 [shape = 'u32[]', space=smem, size = 0x4, offset = 0x4, fixed_abs, tag = 'smem constant byte address 0x4 - core index']
  #allocation1 [shape = 'u32[144,128]{1,0:T(1,128)}', space=vmem, size = 0x12000, scoped, tag = 'internal scratch']
  %s0 = inlined_call_operand.hbm [shape: f32[16,128], index: 0, kind: input, shape index: {}]
  %s1 = inlined_call_operand.hbm [shape: f32[16,128], index: 1, kind: output, shape index: {}]
  %s2 = sld [smem:[#allocation0]]
  $region18: #{tpu_custom_call.1} parent=0
    _
  %s4 = ssub.s32 1, %s2
  %s5 = scalar_select 0, %s4, %s2
  $region1: #{tpu_custom_call.1} parent=0
    #allocation2 [shape = 'u8[8192]{0}', space=vmem, size = 0x2000, scoped, tag = 'input window, operand 0, single buffered']
    #allocation3 [shape = 's32[1]{0}', space=sflag, size = 0x4, scoped, tag = 'scoped memory for tpu_custom_call.1']
    #allocation4 [shape = 's32[1]{0}', space=sflag, size = 0x4, scoped, tag = 'scoped memory for tpu_custom_call.1']
    #allocation5 [shape = 'u8[8192]{0}', space=vmem, size = 0x2000, scoped, tag = 'output window, operand 0, single buffered']
    %6 = vsyncpa [#allocation3], 0
    %7 = vsyncpa [#allocation4], 0
    // Predicated region
    $region2: #{tpu_custom_call.1} parent=1 // pred_check
      _
    $region3: #{tpu_custom_call.1} parent=1 // pred_check_branch
      %9 = sbr.rel (0) target = $region5
    $region4: #{tpu_custom_call.1} parent=1 // pred_region
      %s11 = ssub.s32 256, 256
      %12 = vsyncadd [#allocation3], %s11
      %s13 = sshll.u32 [#allocation2], 4
      %s14 = int_to_ptr.vmem [resolvable:$true] %s13
      %19 = dma.hbm_to_vmem [thread:$0]  %s0, 256, %s14, [#allocation3], 128, 128, 8
    $region5: #{tpu_custom_call.1} parent=1 // pred_fallthru
      _
    // Predicated region
    $region6: #{tpu_custom_call.1} parent=1 // pred_check
      _
    $region7: #{tpu_custom_call.1} parent=1 // pred_check_branch
      %21 = sbr.rel (0) target = $region9
    $region8: #{tpu_custom_call.1} parent=1 // pred_region
      %22 = dma.done [#allocation3], 256
    $region9: #{tpu_custom_call.1} parent=1 // pred_fallthru
      _
    %v23 = vld [vmem:[#allocation2] sm:$0xff]
    %v24 = vld [vmem:[#allocation2 + $0x8] sm:$0xff]
    %v25 = vmul.f32 %v23, 0.01
    %v26 = vmul.f32 %v24, 0.01
    %v27 = vmax.f32 %v23, %v25
    %v28 = vmax.f32 %v24, %v26
    %29 = vst [vmem:[#allocation5] sm:$0xff] %v27
    %30 = vst [vmem:[#allocation5 + $0x8] sm:$0xff] %v28
    // Predicated region
    $region10: #{tpu_custom_call.1} parent=1 // pred_check
      _
    $region11: #{tpu_custom_call.1} parent=1 // pred_check_branch
      %32 = sbr.rel (0) target = $region13
    $region12: #{tpu_custom_call.1} parent=1 // pred_region
      %s34 = ssub.s32 256, 256
      %35 = vsyncadd [#allocation4], %s34
      %s36 = sshll.u32 [#allocation5], 4
      %s37 = int_to_ptr.vmem [resolvable:$true] %s36
      %42 = dma.vmem_to_hbm [thread:$0]  %s37, 256, %s1, [#allocation4], 128, 128, 8
    $region13: #{tpu_custom_call.1} parent=1 // pred_fallthru
      _
    // Predicated region
    $region14: #{tpu_custom_call.1} parent=1 // pred_check
      _
    $region15: #{tpu_custom_call.1} parent=1 // pred_check_branch
      %44 = sbr.rel (0) target = $region17
    $region16: #{tpu_custom_call.1} parent=1 // pred_region
      %45 = dma.done [#allocation4], 256
    $region17: #{tpu_custom_call.1} parent=1 // pred_fallthru
      _
    %46 = vsyncpa [#allocation3], 1
    %47 = vsyncpa [#allocation4], 1

</llo_original>
